<compile_context>
chip_gen: v7x
topology: tpu7x:2x2x1
jax: 0.10.0
libtpu: 0.0.40
codegen_flags: <defaults>
</compile_context>

<pallas_src>
import functools
import math

import jax
import jax.numpy as jnp
from jax import lax
from jax.experimental import pallas as pl
from jax.experimental.pallas import tpu as pltpu


def _round_up(x: int, m: int) -> int:
    return (x + m - 1) // m * m


def _vmem_limit_bytes() -> int:
    cap = 64 * 1024 * 1024                     # conservative default (v7x-sized VMEM)
    try:
        cap = int(pltpu.get_tpu_info().vmem_capacity_bytes)
    except Exception:
        pass
    # ~48 MiB on v7x (64 MiB/TC), ~96 MiB on v5e/v6e (128 MiB).
    return max(32 * 1024 * 1024, min(cap * 3 // 4, 100 * 1024 * 1024))


def _choose_tiles(n, d_in, dp, xb, wb, ob, budget):
    """Pick (tm, n_tiles, tk, n_k) fitting the double-buffered VMEM budget."""
    tm_cap = 1024 if budget >= 64 * 1024 * 1024 else 512
    while True:
        n_tiles = max(1, math.ceil(n / tm_cap))
        tm = _round_up(math.ceil(n / n_tiles), 8)        # balanced batch tiles

        def need(tk):
            return (2 * tm * tk * xb                      # x tile (double-buffered)
                    + 2 * tk * dp * wb                    # weight tile
                    + tm * dp * 4                         # f32 accumulator scratch
                    + 2 * tm * dp * ob                    # pass-2 output tile
                    + 6 * 8 * dp * 4)                     # resident stats / gamma-beta

        if need(d_in) <= budget:
            return tm, n_tiles, d_in, 1                   # whole reduction dim in one block
        tk = _round_up(min(d_in, 2048), 256)              # MXU-friendly K tile
        while tk > 256 and need(tk) > budget:
            tk //= 2
        if need(tk) <= budget or tm_cap <= 8:
            return tm, n_tiles, tk, math.ceil(d_in / tk)
        tm_cap = max(8, tm_cap // 2)


# ---------------------------------------------------------------------------
# Pass 1: per-feature batch sum / sum-of-squares of y = x @ W (no y writeback).
# ---------------------------------------------------------------------------
def _stats_kernel(x_ref, w_ref, s_ref, acc_ref):
    i = pl.program_id(1)                      # batch tile within this core's split
    k = pl.program_id(2)                      # K (d_in) tile

    @pl.when((i == 0) & (k == 0))
    def _():
        s_ref[...] = jnp.zeros_like(s_ref)

    @pl.when(k == 0)
    def _():
        acc_ref[...] = jnp.zeros_like(acc_ref)

    # MXU matmul with f32 accumulation; no bias (cancelled by BN mean subtraction).
    acc_ref[...] += jnp.dot(x_ref[...], w_ref[...], preferred_element_type=jnp.float32)

    @pl.when(k == pl.num_programs(2) - 1)
    def _():
        y = acc_ref[...]
        # Cross-sublane batch reduction rides the XLU; MXU slot stays free.
        s_ref[0:1, :] += jnp.sum(y, axis=0, keepdims=True)
        s_ref[1:2, :] += jnp.sum(y * y, axis=0, keepdims=True)


# ---------------------------------------------------------------------------
# Pass 2: recompute y = x @ W, fold BatchNorm finalize + LeakyReLU, store once.
# (Dropout p=0.0 -> identity.)
# ---------------------------------------------------------------------------
def _norm_act_kernel(x_ref, w_ref, stats_ref, gb_ref, o_ref, acc_ref, *,
                     inv_n, eps, negative_slope):
    k = pl.program_id(1)

    @pl.when(k == 0)
    def _():
        acc_ref[...] = jnp.zeros_like(acc_ref)

    acc_ref[...] += jnp.dot(x_ref[...], w_ref[...], preferred_element_type=jnp.float32)

    @pl.when(k == pl.num_programs(1) - 1)
    def _():
        s = jnp.sum(stats_ref[...], axis=0)                       # fold per-core partials
        mean = s[0:1, :] * inv_n
        var = jnp.maximum(s[1:2, :] * inv_n - mean * mean, 0.0)   # biased, clamped vs cancellation
        scale = gb_ref[0:1, :] * lax.rsqrt(var + eps)             # rsqrt -> EUP slot
        shift = gb_ref[1:2, :] - mean * scale
        z = acc_ref[...] * scale + shift
        o_ref[...] = jnp.where(z >= 0.0, z, negative_slope * z).astype(o_ref.dtype)


def linear_block(x, w, b, gamma, beta, *, eps=1e-5, negative_slope=0.1, drop=0.0):
    """Forward pass of LinearBlock (train-mode BatchNorm statistics).

    x:     (N, D_in)
    w:     (D_out, D_in)   PyTorch nn.Linear weight layout
    b:     (D_out,)        unused numerically (cancelled by BatchNorm), kept for API parity
    gamma: (D_out,)        BatchNorm weight
    beta:  (D_out,)        BatchNorm bias
    returns (N, D_out)
    """
    if drop != 0.0:
        # TODO(synk): nonzero dropout (pltpu.prng_* masking) not implemented.
        raise NotImplementedError("dropout p>0 not implemented")
    del b  # per-feature constant is exactly cancelled by the batch-mean subtraction

    n, d_in = x.shape
    d_out = w.shape[0]
    out_dtype = x.dtype
    xb = x.dtype.itemsize
    wb = w.dtype.itemsize
    ob = jnp.dtype(out_dtype).itemsize

    # Lane-dense output features: 128 for small layers, 256 (full v6e/v7x MXU pass) otherwise.
    dp = _round_up(d_out, 128 if d_out <= 128 else 256)

    vmem_limit = _vmem_limit_bytes()
    tm, n_tiles, tk, n_k = _choose_tiles(n, d_in, dp, xb, wb, ob, int(vmem_limit * 0.85))
    n_pad = tm * n_tiles
    d_in_p = tk * n_k

    # Split pass 1's batch across the two TensorCores on v7x (harmless elsewhere).
    n_split = 2 if (n_tiles >= 2 and n_tiles % 2 == 0) else 1
    tiles_per_split = n_tiles // n_split

    # Host-side layout glue, once per call.  (Cache w_t outside the call if weights are static.)
    w_t = jnp.zeros((d_in_p, dp), dtype=w.dtype).at[:d_in, :d_out].set(w.T)
    if n_pad != n or d_in_p != d_in:
        x_p = jnp.zeros((n_pad, d_in_p), dtype=x.dtype).at[:n, :d_in].set(x)
    else:
        x_p = x
    gb = (jnp.zeros((8, dp), jnp.float32)
          .at[0, :d_out].set(gamma.astype(jnp.float32))
          .at[1, :d_out].set(beta.astype(jnp.float32)))

    # ---- pass 1: batch statistics of y = x @ W (no y materialization) ----
    stats = pl.pallas_call(
        _stats_kernel,
        grid=(n_split, tiles_per_split, n_k),
        in_specs=[
            pl.BlockSpec((tm, tk), lambda c, i, k: (c * tiles_per_split + i, k)),
            pl.BlockSpec((tk, dp), lambda c, i, k: (k, 0)),
        ],
        out_specs=pl.BlockSpec((None, 8, dp), lambda c, i, k: (c, 0, 0)),
        out_shape=jax.ShapeDtypeStruct((n_split, 8, dp), jnp.float32),
        scratch_shapes=[pltpu.VMEM((tm, dp), jnp.float32)],
        compiler_params=pltpu.CompilerParams(
            dimension_semantics=("parallel", "arbitrary", "arbitrary"),
            vmem_limit_bytes=vmem_limit),
    )(x_p, w_t)

    # ---- pass 2: recompute y, folded BN scale/shift + LeakyReLU (batch axis parallel) ----
    out_p = pl.pallas_call(
        functools.partial(_norm_act_kernel, inv_n=1.0 / n, eps=float(eps),
                          negative_slope=float(negative_slope)),
        grid=(n_tiles, n_k),
        in_specs=[
            pl.BlockSpec((tm, tk), lambda i, k: (i, k)),           # streamed x tiles
            pl.BlockSpec((tk, dp), lambda i, k: (k, 0)),           # weight tiles
            pl.BlockSpec((n_split, 8, dp), lambda i, k: (0, 0, 0)),  # resident raw stats
            pl.BlockSpec((8, dp), lambda i, k: (0, 0)),            # resident gamma/beta
        ],
        out_specs=pl.BlockSpec((tm, dp), lambda i, k: (i, 0)),
        out_shape=jax.ShapeDtypeStruct((n_pad, dp), out_dtype),
        scratch_shapes=[pltpu.VMEM((tm, dp), jnp.float32)],
        compiler_params=pltpu.CompilerParams(
            dimension_semantics=("parallel", "arbitrary"),
            vmem_limit_bytes=vmem_limit),
    )(x_p, w_t, stats, gb)

    return out_p[:n, :d_out]


if __name__ == "__main__":
    # Small deterministic problem: batch=8, input_dim=32, output_dim=32.
    batch, d_in, d_out = 8, 32, 32
    key = jax.random.PRNGKey(0)
    kx, kw, kb = jax.random.split(key, 3)

    x = jax.random.normal(kx, (batch, d_in), dtype=jnp.float32)

    # Linear weight/bias ~ N(0, 0.02) (module's init_weights); BatchNorm defaults.
    w = 0.02 * jax.random.normal(kw, (d_out, d_in), dtype=jnp.float32)  # (out, in)
    b = 0.02 * jax.random.normal(kb, (d_out,), dtype=jnp.float32)
    gamma = jnp.ones((d_out,), dtype=jnp.float32)
    beta = jnp.zeros((d_out,), dtype=jnp.float32)

    out = linear_block(x, w, b, gamma, beta)
    jax.block_until_ready(out)

    # Pure-JAX reference with the full PyTorch semantics (bias included); the bias
    # cancels inside train-mode BatchNorm, so the bias-free kernel must match.
    y_ref = x @ w.T + b
    mean = y_ref.mean(axis=0, keepdims=True)
    var = ((y_ref - mean) ** 2).mean(axis=0, keepdims=True)
    z_ref = gamma[None, :] * (y_ref - mean) / jnp.sqrt(var + 1e-5) + beta[None, :]
    ref = jnp.where(z_ref >= 0.0, z_ref, 0.1 * z_ref)

    assert out.shape == (batch, d_out)
    assert jnp.allclose(out, ref, atol=1e-4, rtol=1e-4), "mismatch vs reference"

    print("KERNEL_OK")
</pallas_src>

<mosaic_0001>
module attributes {stable_mosaic.version = 11 : i64} {
  func.func @_stats_kernel(%arg0: i32, %arg1: i32, %arg2: i32, %arg3: memref<8x32xf32, #tpu.memory_space<vmem>>, %arg4: memref<32x128xf32, #tpu.memory_space<vmem>>, %arg5: memref<1x8x128xf32, #tpu.memory_space<vmem>>, %arg6: memref<8x128xf32, #tpu.memory_space<vmem>>) attributes {dimension_semantics = [#tpu.dimension_semantics<parallel>, #tpu.dimension_semantics<arbitrary>, #tpu.dimension_semantics<arbitrary>], iteration_bounds = array<i64: 1, 1, 1>, scalar_prefetch = 0 : i64, scratch_operands = 1 : i64, tpu.core_type = #tpu.core_type<tc>, window_params = [{transform_indices = @transform_0, window_bounds = array<i64: 8, 32>}, {transform_indices = @transform_1, window_bounds = array<i64: 32, 128>}, {transform_indices = @transform_2, window_bounds = array<i64: 1, 8, 128>}]} {
    %c0_i32 = arith.constant 0 : i32
    %0 = arith.cmpi eq, %arg1, %c0_i32 : i32
    %c0_i32_0 = arith.constant 0 : i32
    %1 = arith.cmpi eq, %arg2, %c0_i32_0 : i32
    %2 = arith.andi %0, %1 : i1
    %3 = arith.extui %2 : i1 to i32
    %c0_i32_1 = arith.constant 0 : i32
    %4 = arith.cmpi ne, %3, %c0_i32_1 : i32
    scf.if %4 {
      %cst_13 = arith.constant 0.000000e+00 : f32
      %17 = vector.broadcast %cst_13 : f32 to vector<8x128xf32>
      %c0_14 = arith.constant 0 : index
      %c0_15 = arith.constant 0 : index
      %c0_16 = arith.constant 0 : index
      %18 = vector.load %arg5[%c0_14, %c0_15, %c0_16] : memref<1x8x128xf32, #tpu.memory_space<vmem>>, vector<1x8x128xf32>
      %19 = vector.shape_cast %18 : vector<1x8x128xf32> to vector<8x128xf32>
      %20 = vector.shape_cast %17 : vector<8x128xf32> to vector<1x8x128xf32>
      tpu.vector_store %arg5[%c0_14, %c0_15, %c0_16], %20 {strides = array<i32>} : memref<1x8x128xf32, #tpu.memory_space<vmem>>, vector<1x8x128xf32>,
    } else {
    }
    %c0_i32_2 = arith.constant 0 : i32
    %5 = arith.cmpi eq, %arg2, %c0_i32_2 : i32
    %6 = arith.extui %5 : i1 to i32
    %c0_i32_3 = arith.constant 0 : i32
    %7 = arith.cmpi ne, %6, %c0_i32_3 : i32
    scf.if %7 {
      %cst_13 = arith.constant 0.000000e+00 : f32
      %17 = vector.broadcast %cst_13 : f32 to vector<8x128xf32>
      %c0_14 = arith.constant 0 : index
      %c0_15 = arith.constant 0 : index
      %18 = vector.load %arg6[%c0_14, %c0_15] : memref<8x128xf32, #tpu.memory_space<vmem>>, vector<8x128xf32>
      tpu.vector_store %arg6[%c0_14, %c0_15], %17 {strides = array<i32>} : memref<8x128xf32, #tpu.memory_space<vmem>>, vector<8x128xf32>,
    } else {
    }
    %c0 = arith.constant 0 : index
    %c0_4 = arith.constant 0 : index
    %8 = vector.load %arg6[%c0, %c0_4] : memref<8x128xf32, #tpu.memory_space<vmem>>, vector<8x128xf32>
    %c0_5 = arith.constant 0 : index
    %c0_6 = arith.constant 0 : index
    %9 = vector.load %arg3[%c0_5, %c0_6] : memref<8x32xf32, #tpu.memory_space<vmem>>, vector<8x32xf32>
    %c0_7 = arith.constant 0 : index
    %c0_8 = arith.constant 0 : index
    %10 = vector.load %arg4[%c0_7, %c0_8] : memref<32x128xf32, #tpu.memory_space<vmem>>, vector<32x128xf32>
    %cst = arith.constant dense<0.000000e+00> : vector<8x128xf32>
    %11 = tpu.matmul %9, %10, %cst {dimension_numbers = #tpu.dot_dimension_numbers<[1], [0], [0], [1], [0, 0, 1, 1], [], []>} : vector<8x32xf32>, vector<32x128xf32>, vector<8x128xf32> -> vector<8x128xf32>
    %12 = arith.addf %8, %11 : vector<8x128xf32>
    %c0_9 = arith.constant 0 : index
    %c0_10 = arith.constant 0 : index
    %13 = vector.load %arg6[%c0_9, %c0_10] : memref<8x128xf32, #tpu.memory_space<vmem>>, vector<8x128xf32>
    tpu.vector_store %arg6[%c0_9, %c0_10], %12 {strides = array<i32>} : memref<8x128xf32, #tpu.memory_space<vmem>>, vector<8x128xf32>,
    %c0_i32_11 = arith.constant 0 : i32
    %14 = arith.cmpi eq, %arg2, %c0_i32_11 : i32
    %15 = arith.extui %14 : i1 to i32
    %c0_i32_12 = arith.constant 0 : i32
    %16 = arith.cmpi ne, %15, %c0_i32_12 : i32
    scf.if %16 {
      %c0_13 = arith.constant 0 : index
      %c0_14 = arith.constant 0 : index
      %17 = vector.load %arg6[%c0_13, %c0_14] : memref<8x128xf32, #tpu.memory_space<vmem>>, vector<8x128xf32>
      %c0_15 = arith.constant 0 : index
      %c0_16 = arith.constant 0 : index
      %c0_17 = arith.constant 0 : index
      %18 = vector.load %arg5[%c0_15, %c0_16, %c0_17] : memref<1x8x128xf32, #tpu.memory_space<vmem>>, vector<1x1x128xf32>
      %19 = vector.shape_cast %18 : vector<1x1x128xf32> to vector<1x128xf32>
      %cst_18 = arith.constant dense<0.000000e+00> : vector<128xf32>
      %20 = vector.multi_reduction <add>, %17, %cst_18 [0] : vector<8x128xf32> to vector<128xf32>
      %21 = vector.shape_cast %20 : vector<128xf32> to vector<1x128xf32>
      %22 = arith.addf %19, %21 : vector<1x128xf32>
      %c0_19 = arith.constant 0 : index
      %c0_20 = arith.constant 0 : index
      %c0_21 = arith.constant 0 : index
      %23 = vector.load %arg5[%c0_19, %c0_20, %c0_21] : memref<1x8x128xf32, #tpu.memory_space<vmem>>, vector<1x1x128xf32>
      %24 = vector.shape_cast %23 : vector<1x1x128xf32> to vector<1x128xf32>
      %25 = vector.shape_cast %22 : vector<1x128xf32> to vector<1x1x128xf32>
      tpu.vector_store %arg5[%c0_19, %c0_20, %c0_21], %25 {strides = array<i32>} : memref<1x8x128xf32, #tpu.memory_space<vmem>>, vector<1x1x128xf32>,
      %c0_22 = arith.constant 0 : index
      %c1 = arith.constant 1 : index
      %c0_23 = arith.constant 0 : index
      %26 = vector.load %arg5[%c0_22, %c1, %c0_23] : memref<1x8x128xf32, #tpu.memory_space<vmem>>, vector<1x1x128xf32>
      %27 = vector.shape_cast %26 : vector<1x1x128xf32> to vector<1x128xf32>
      %28 = arith.mulf %17, %17 : vector<8x128xf32>
      %cst_24 = arith.constant dense<0.000000e+00> : vector<128xf32>
      %29 = vector.multi_reduction <add>, %28, %cst_24 [0] : vector<8x128xf32> to vector<128xf32>
      %30 = vector.shape_cast %29 : vector<128xf32> to vector<1x128xf32>
      %31 = arith.addf %27, %30 : vector<1x128xf32>
      %c0_25 = arith.constant 0 : index
      %c1_26 = arith.constant 1 : index
      %c0_27 = arith.constant 0 : index
      %32 = vector.load %arg5[%c0_25, %c1_26, %c0_27] : memref<1x8x128xf32, #tpu.memory_space<vmem>>, vector<1x1x128xf32>
      %33 = vector.shape_cast %32 : vector<1x1x128xf32> to vector<1x128xf32>
      %34 = vector.shape_cast %31 : vector<1x128xf32> to vector<1x1x128xf32>
      tpu.vector_store %arg5[%c0_25, %c1_26, %c0_27], %34 {strides = array<i32>} : memref<1x8x128xf32, #tpu.memory_space<vmem>>, vector<1x1x128xf32>,
    } else {
    }
    return
  }
  func.func @transform_0(%arg0: i32, %arg1: i32, %arg2: i32) -> (i32, i32) {
    %c1_i32 = arith.constant 1 : i32
    %0 = arith.muli %arg0, %c1_i32 : i32
    %1 = arith.addi %0, %arg1 : i32
    %c0_i32 = arith.constant 0 : i32
    return %1, %arg2 : i32, i32
  }
  func.func @transform_1(%arg0: i32, %arg1: i32, %arg2: i32) -> (i32, i32) {
    %c0_i32 = arith.constant 0 : i32
    %c0_i32_0 = arith.constant 0 : i32
    return %arg2, %c0_i32 : i32, i32
  }
  func.func @transform_2(%arg0: i32, %arg1: i32, %arg2: i32) -> (i32, i32, i32) {
    %c0_i32 = arith.constant 0 : i32
    %c0_i32_0 = arith.constant 0 : i32
    %c0_i32_1 = arith.constant 0 : i32
    return %arg0, %c0_i32, %c0_i32_0 : i32, i32, i32
  }
}

</mosaic_0001>

<llo_original>
// kernel: tpu_custom_call.1
$region0: #{tpu_custom_call.1}
  #allocation0 [shape = 'u32[]', space=smem, size = 0x4, offset = 0x4, fixed_abs, tag = 'smem constant byte address 0x4 - core index']
  #allocation1 [shape = 'u32[144,128]{1,0:T(1,128)}', space=vmem, size = 0x12000, scoped, tag = 'internal scratch']
  #allocation2 [shape = 'f32[8,128]{1,0:T(8,128)}', space=vmem, size = 0x1000, scoped, tag = 'scratch operand']
  %s0 = inlined_call_operand.hbm [shape: f32[8,32], index: 0, kind: input, shape index: {}]
  %s1 = inlined_call_operand.hbm [shape: f32[32,128], index: 1, kind: input, shape index: {}]
  %s2 = inlined_call_operand.hbm [shape: f32[1,8,128], index: 2, kind: output, shape index: {}]
  %s3 = sld [smem:[#allocation0]]
  $region38: #{tpu_custom_call.1} parent=0
    _
  %s5 = ssub.s32 1, %s3
  %s6 = scalar_select 0, %s5, %s3
  $region1: #{tpu_custom_call.1} parent=0
    #allocation3 [shape = 'u8[4096]{0}', space=vmem, size = 0x1000, scoped, tag = 'input window, operand 0, single buffered']
    #allocation4 [shape = 's32[1]{0}', space=sflag, size = 0x4, scoped, tag = 'scoped memory for tpu_custom_call.1']
    #allocation5 [shape = 's32[1]{0}', space=sflag, size = 0x4, scoped, tag = 'scoped memory for tpu_custom_call.1']
    #allocation6 [shape = 'u8[16384]{0}', space=vmem, size = 0x4000, scoped, tag = 'input window, operand 1, single buffered']
    #allocation7 [shape = 's32[1]{0}', space=sflag, size = 0x4, scoped, tag = 'scoped memory for tpu_custom_call.1']
    #allocation8 [shape = 'u8[4096]{0}', space=vmem, size = 0x1000, scoped, tag = 'output window, operand 0, single buffered']
    %7 = vsyncpa [#allocation4], 0
    %8 = vsyncpa [#allocation7], 0
    %9 = vsyncpa [#allocation5], 0
    // Predicated region
    $region2: #{tpu_custom_call.1} parent=1 // pred_check
      _
    $region3: #{tpu_custom_call.1} parent=1 // pred_check_branch
      %11 = sbr.rel (0) target = $region5
    $region4: #{tpu_custom_call.1} parent=1 // pred_region
      %s12 = sadd.s32 0, 0
      %s14 = ssub.s32 128, 128
      %15 = vsyncadd [#allocation4], %s14
      %s16 = smul.addr %s12, 128
      %s17 = scalar_lea.hbm %s0, %s16
      %s19 = sshll.u32 [#allocation3], 4
      %s20 = int_to_ptr.vmem [resolvable:$true] %s19
      %22 = dma.hbm_to_vmem [thread:$0]  %s17, 128, %s20, [#allocation4]
    $region5: #{tpu_custom_call.1} parent=1 // pred_fallthru
      _
    // Predicated region
    $region6: #{tpu_custom_call.1} parent=1 // pred_check
      _
    $region7: #{tpu_custom_call.1} parent=1 // pred_check_branch
      %24 = sbr.rel (0) target = $region9
    $region8: #{tpu_custom_call.1} parent=1 // pred_region
      %s26 = ssub.s32 512, 512
      %27 = vsyncadd [#allocation7], %s26
      %s28 = sshll.u32 [#allocation6], 4
      %s29 = int_to_ptr.vmem [resolvable:$true] %s28
      %34 = dma.hbm_to_vmem [thread:$0]  %s1, 512, %s29, [#allocation7], 128, 128, 8
    $region9: #{tpu_custom_call.1} parent=1 // pred_fallthru
      _
    // Predicated region
    $region10: #{tpu_custom_call.1} parent=1 // pred_check
      _
    $region11: #{tpu_custom_call.1} parent=1 // pred_check_branch
      %36 = sbr.rel (0) target = $region13
    $region12: #{tpu_custom_call.1} parent=1 // pred_region
      %37 = dma.done [#allocation4], 128
    $region13: #{tpu_custom_call.1} parent=1 // pred_fallthru
      _
    // Predicated region
    $region14: #{tpu_custom_call.1} parent=1 // pred_check
      _
    $region15: #{tpu_custom_call.1} parent=1 // pred_check_branch
      %39 = sbr.rel (0) target = $region17
    $region16: #{tpu_custom_call.1} parent=1 // pred_region
      %40 = dma.done [#allocation7], 512
    $region17: #{tpu_custom_call.1} parent=1 // pred_fallthru
      _
    %s41 = sadd.s32 0, 0
    %p42 = scmp.eq.s32.totalorder 0, 0
    %p43 = scmp.eq.s32.totalorder 0, 0
    %p44 = pnand %p42, %p43
    %p45 = pneg %p44
    // Predicated region
    $region18: #{tpu_custom_call.1} parent=1 // pred_check
      _
    $region19: #{tpu_custom_call.1} parent=1 // pred_check_branch
      %47 = sbr.rel (%p44) target = $region21
    $region20: #{tpu_custom_call.1} parent=1 // pred_region
      %48 = vst [vmem:[#allocation8] sm:$0xff] 0.0
    $region21: #{tpu_custom_call.1} parent=1 // pred_fallthru
      _
    // Predicated region
    $region22: #{tpu_custom_call.1} parent=1 // pred_check
      %p49 = pneg %p43
    $region23: #{tpu_custom_call.1} parent=1 // pred_check_branch
      %51 = sbr.rel (%p49) target = $region25
    $region24: #{tpu_custom_call.1} parent=1 // pred_region
      %52 = vst [vmem:[#allocation2] sm:$0xff] 0.0
    $region25: #{tpu_custom_call.1} parent=1 // pred_fallthru
      _
    %v53 = vld [vmem:[#allocation2] sm:$0xff]
    %v54 = vld [vmem:[#allocation3] sm:$0xff]
    %v55 = vld [vmem:[#allocation6] sm:$0xff]
    %v56 = vld [vmem:[#allocation6 + $0x8] sm:$0xff]
    %v57 = vld [vmem:[#allocation6 + $0x10] sm:$0xff]
    %v58 = vld [vmem:[#allocation6 + $0x18] sm:$0xff]
    %vm59 = vcmask 261120
    %v61 = vsel %vm59, %v54, 0
    %63 = vmatprep.subr.mxu0 0.0
    %64 = vmatpush1.msra.mxu0 %v55
    %65 = vmatprep.subr.mxu0 0.0
    %66 = vmatpush1.msra.mxu0 %v56
    %67 = vmatprep.subr.mxu0 0.0
    %68 = vmatpush1.msra.mxu0 %v57
    %69 = vmatprep.subr.mxu0 0.0
    %70 = vmatpush1.msra.mxu0 %v58
    %71 = vmatprep.subr.mxu0 0.0
    %72 = vmatpush1.msra.mxu0 0.0
    %73 = vmatprep.subr.mxu0 0.0
    %74 = vmatpush1.msra.mxu0 0.0
    %75 = vmatprep.subr.mxu0 0.0
    %76 = vmatpush1.msra.mxu0 0.0
    %77 = vmatprep.subr.mxu0 0.0
    %78 = vmatpush1.msra.mxu0 0.0
    %79 = vmatprep.subr.mxu0 0.0
    %80 = vmatpush1.msra.mxu0 0.0
    %81 = vmatprep.subr.mxu0 0.0
    %82 = vmatpush1.msra.mxu0 0.0
    %83 = vmatprep.subr.mxu0 0.0
    %84 = vmatpush1.msra.mxu0 0.0
    %85 = vmatprep.subr.mxu0 0.0
    %86 = vmatpush1.msra.mxu0 0.0
    %87 = vmatprep.subr.mxu0 0.0
    %88 = vmatpush1.msra.mxu0 0.0
    %89 = vmatprep.subr.mxu0 0.0
    %90 = vmatpush1.msra.mxu0 0.0
    %91 = vmatprep.subr.mxu0 0.0
    %92 = vmatpush1.msra.mxu0 0.0
    %93 = vmatprep.subr.mxu0 0.0
    %94 = vmatpush1.msra.mxu0 0.0
    %95 = vmatprep.subr.mxu0 0.0
    %96 = vmatpush1.msra.mxu0 0.0
    %97 = vmatprep.subr.mxu0 0.0
    %98 = vmatpush1.msra.mxu0 0.0
    %99 = vmatprep.subr.mxu0 0.0
    %100 = vmatpush1.msra.mxu0 0.0
    %101 = vmatprep.subr.mxu0 0.0
    %102 = vmatpush1.msra.mxu0 0.0
    %103 = vmatprep.subr.mxu0 0.0
    %104 = vmatpush1.msra.mxu0 0.0
    %105 = vmatprep.subr.mxu0 0.0
    %106 = vmatpush1.msra.mxu0 0.0
    %107 = vmatprep.subr.mxu0 0.0
    %108 = vmatpush1.msra.mxu0 0.0
    %109 = vmatprep.subr.mxu0 0.0
    %110 = vmatpush1.msra.mxu0 0.0
    %111 = vmatprep.subr.mxu0 0.0
    %112 = vmatpush1.msra.mxu0 0.0
    %113 = vmatprep.subr.mxu0 0.0
    %114 = vmatpush1.msra.mxu0 0.0
    %115 = vmatprep.subr.mxu0 0.0
    %116 = vmatpush1.msra.mxu0 0.0
    %117 = vmatprep.subr.mxu0 0.0
    %118 = vmatpush1.msra.mxu0 0.0
    %119 = vmatprep.subr.mxu0 0.0
    %120 = vmatpush1.msra.mxu0 0.0
    %121 = vmatprep.subr.mxu0 0.0
    %122 = vmatpush1.msra.mxu0 0.0
    %123 = vmatprep.subr.mxu0 0.0
    %124 = vmatpush1.msra.mxu0 0.0
    %125 = vmatprep.subr.mxu0 0.0
    %126 = vmatpush1.msra.mxu0 0.0
    %127 = vmatprep.mubr.f32.mxu0 0.0
    %128 = vmatmul.mubr.f32.gmra.mrb[0].mxu0 %v61
    %v129 = vpop.f32.mrb[0].mxu0
    %v130 = vadd.f32 0.0, %v129
    %v131 = vpop.f32.mrb[0].mxu0
    %132 = vdwg.mxu0
    %v133 = vadd.f32 %v53, %v130
    %134 = vst [vmem:[#allocation2] sm:$0xff] %v133
    // Predicated region
    $region26: #{tpu_custom_call.1} parent=1 // pred_check
      %p135 = pneg %p43
    $region27: #{tpu_custom_call.1} parent=1 // pred_check_branch
      %137 = sbr.rel (%p135) target = $region29
    $region28: #{tpu_custom_call.1} parent=1 // pred_region
      %v138 = vld [vmem:[#allocation2] sm:$0xff]
      %v139 = vld [vmem:[#allocation8] sm:$0x1]
      %v140 = vrot.slane %v138, 4
      %v141 = vadd.f32 %v138, %v140
      %v142 = vrot.slane %v141, 2
      %v143 = vadd.f32 %v141, %v142
      %v144 = vrot.slane %v143, 1
      %v145 = vadd.f32 %v143, %v144
      %v146 = vadd.f32 %v139, %v145
      %147 = vst [vmem:[#allocation8] sm:$0x1] %v146
      %v148 = vld [vmem:[#allocation8 + $0x1] sm:$0x1]
      %v149 = vmul.f32 %v138, %v138
      %v150 = vrot.slane %v149, 4
      %v151 = vadd.f32 %v149, %v150
      %v152 = vrot.slane %v151, 2
      %v153 = vadd.f32 %v151, %v152
      %v154 = vrot.slane %v153, 1
      %v155 = vadd.f32 %v153, %v154
      %v156 = vadd.f32 %v148, %v155
      %157 = vst [vmem:[#allocation8 + $0x1] sm:$0x1] %v156
    $region29: #{tpu_custom_call.1} parent=1 // pred_fallthru
      _
    // Predicated region
    $region30: #{tpu_custom_call.1} parent=1 // pred_check
      _
    $region31: #{tpu_custom_call.1} parent=1 // pred_check_branch
      %159 = sbr.rel (0) target = $region33
    $region32: #{tpu_custom_call.1} parent=1 // pred_region
      %s161 = ssub.s32 128, 128
      %162 = vsyncadd [#allocation5], %s161
      %s164 = sshll.u32 [#allocation8], 4
      %s165 = int_to_ptr.vmem [resolvable:$true] %s164
      %167 = dma.vmem_to_hbm [thread:$0]  %s165, 128, %s2, [#allocation5]
    $region33: #{tpu_custom_call.1} parent=1 // pred_fallthru
      _
    // Predicated region
    $region34: #{tpu_custom_call.1} parent=1 // pred_check
      _
    $region35: #{tpu_custom_call.1} parent=1 // pred_check_branch
      %169 = sbr.rel (0) target = $region37
    $region36: #{tpu_custom_call.1} parent=1 // pred_region
      %170 = dma.done [#allocation5], 128
    $region37: #{tpu_custom_call.1} parent=1 // pred_fallthru
      _
    %171 = vsyncpa [#allocation4], 1
    %172 = vsyncpa [#allocation7], 1
    %173 = vsyncpa [#allocation5], 1

</llo_original>
